<compile_context>
chip_gen: v7x
topology: tpu7x:2x2x1
jax: 0.10.0
libtpu: 0.0.40
codegen_flags: <defaults>
</compile_context>

<pallas_src>
import jax
import jax.numpy as jnp
from jax import lax
from jax.experimental import pallas as pl
from jax.experimental.pallas import tpu as pltpu

HIDDEN_DIM = 32
INPUT_SIZE = 1
OUTPUT_SIZE = 1
N_LAYERS = 1


def _rnn_fc_kernel(x_ref,      # (seq, batch, 1)        time-major input
                   h0_ref,     # (batch, hidden)        initial hidden state
                   wih_ref,    # (1, 1, hidden)         W_ih row (input_size == 1)
                   whh_ref,    # (hidden, hidden)       W_hh^T
                   b_ref,      # (1, 1, hidden)         b_ih + b_hh (combined)
                   wfc_ref,    # (1, 1, hidden)         W_fc row (output_size == 1)
                   bfc_ref,    # (1, 1)                 fc bias
                   out_ref,    # (seq, batch)           fc(h_t), time-major
                   hfin_ref,   # (batch, hidden)        final hidden state
                   pre_ref,    # VMEM (seq, batch, hidden) scratch: input projection
                   hs_ref):    # VMEM (seq, batch, hidden) scratch: all hidden states
    seq = x_ref.shape[0]

    # (1) Input projection + biases for ALL timesteps, hoisted out of the loop.
    #     input_size == 1  =>  x @ W_ih^T is an outer product: broadcast multiply.
    # TODO(synk): generalize to input_size > 1 / output_size > 1 with MXU dots if
    #             the module constants ever change (spec fixes them to 1).
    pre_ref[...] = x_ref[...] * wih_ref[...] + b_ref[...]        # (S,B,H)

    # (2) Serial recurrence: only  h @ W_hh^T  +  pre[t]  +  tanh  on the
    #     critical path; h stays register-resident in the loop carry.
    def step(t, h):
        h_new = jnp.tanh(pre_ref[t]
                         + jnp.dot(h, whh_ref[...],
                                   preferred_element_type=jnp.float32))
        hs_ref[t] = h_new
        return h_new

    h_fin = lax.fori_loop(0, seq, step, h0_ref[...], unroll=True)
    hfin_ref[...] = h_fin

    # (3) FC head applied once to all hidden states after the loop
    #     (output_size == 1 -> multiply + lane reduction, single bulk store).
    out_ref[...] = (jnp.sum(hs_ref[...] * wfc_ref[...], axis=-1)
                    + bfc_ref[...])                              # (S,B)


def rnn_forward(x, hidden, params):
    """x: (batch, seq, input_size); hidden: (1, batch, hidden_dim).

    Returns (output, hidden_out) with output (batch*seq, output_size) and
    hidden_out (1, batch, hidden_dim), matching the PyTorch module.
    """
    batch, seq, input_size = x.shape
    assert input_size == INPUT_SIZE == 1

    x_tm = jnp.transpose(x, (1, 0, 2)).astype(jnp.float32)        # (seq, batch, 1)
    h0 = hidden[0].astype(jnp.float32)                            # (batch, hidden)

    wih3 = params["w_ih"].reshape(1, 1, HIDDEN_DIM)               # (H,1) -> (1,1,H)
    whh_t = params["w_hh"].T                                      # (hidden, hidden)
    b3 = (params["b_ih"] + params["b_hh"]).reshape(1, 1, HIDDEN_DIM)
    wfc3 = params["w_fc"].reshape(1, 1, HIDDEN_DIM)               # (1,H) -> (1,1,H)
    bfc = params["b_fc"].reshape(1, 1)                            # (1, 1)

    vmem = pl.BlockSpec(memory_space=pltpu.MemorySpace.VMEM)

    out_sb, h_fin = pl.pallas_call(
        _rnn_fc_kernel,
        out_shape=(
            jax.ShapeDtypeStruct((seq, batch), jnp.float32),
            jax.ShapeDtypeStruct((batch, HIDDEN_DIM), jnp.float32),
        ),
        in_specs=[vmem] * 7,
        out_specs=(vmem, vmem),
        scratch_shapes=[
            pltpu.VMEM((seq, batch, HIDDEN_DIM), jnp.float32),    # pre_ref
            pltpu.VMEM((seq, batch, HIDDEN_DIM), jnp.float32),    # hs_ref
        ],
    )(x_tm, h0, wih3, whh_t, b3, wfc3, bfc)

    # PyTorch: r_out.view(-1, hidden_dim) flattens batch-major -> row b*seq + t.
    output = jnp.transpose(out_sb, (1, 0)).reshape(batch * seq, OUTPUT_SIZE)
    hidden_out = h_fin[None, :, :]
    return output, hidden_out


def init_params(key):
    """Deterministic init matching PyTorch nn.RNN / nn.Linear shapes."""
    k = jax.random.split(key, 6)
    bound = 1.0 / jnp.sqrt(HIDDEN_DIM)
    u = lambda kk, shape, b: jax.random.uniform(kk, shape, jnp.float32, -b, b)
    return {
        "w_ih": u(k[0], (HIDDEN_DIM, INPUT_SIZE), bound),
        "w_hh": u(k[1], (HIDDEN_DIM, HIDDEN_DIM), bound),
        "b_ih": u(k[2], (HIDDEN_DIM,), bound),
        "b_hh": u(k[3], (HIDDEN_DIM,), bound),
        "w_fc": u(k[4], (OUTPUT_SIZE, HIDDEN_DIM), bound),
        "b_fc": u(k[5], (OUTPUT_SIZE,), bound),
    }


def rnn_forward_ref(x, hidden, params):
    """Pure-JAX reference (lax.scan) for correctness check."""
    x_tm = jnp.transpose(x, (1, 0, 2))
    h0 = hidden[0]

    def step(h, x_t):
        h_new = jnp.tanh(x_t @ params["w_ih"].T + params["b_ih"]
                         + h @ params["w_hh"].T + params["b_hh"])
        return h_new, h_new

    h_fin, hs = lax.scan(step, h0, x_tm)                          # (seq, batch, H)
    r_out = jnp.transpose(hs, (1, 0, 2)).reshape(-1, HIDDEN_DIM)
    out = r_out @ params["w_fc"].T + params["b_fc"]
    return out, h_fin[None]


if __name__ == "__main__":
    key = jax.random.PRNGKey(0)
    kp, kx, kh = jax.random.split(key, 3)

    batch, seq = 2, 8
    params = init_params(kp)
    x = jax.random.normal(kx, (batch, seq, INPUT_SIZE), jnp.float32)
    hidden = jax.random.normal(kh, (N_LAYERS, batch, HIDDEN_DIM), jnp.float32)

    out, h_out = rnn_forward(x, hidden, params)
    out = jax.block_until_ready(out)
    h_out = jax.block_until_ready(h_out)

    out_ref, h_ref = rnn_forward_ref(x, hidden, params)
    assert out.shape == (batch * seq, OUTPUT_SIZE)
    assert h_out.shape == (N_LAYERS, batch, HIDDEN_DIM)
    assert jnp.allclose(out, out_ref, atol=1e-5), "output mismatch vs reference"
    assert jnp.allclose(h_out, h_ref, atol=1e-5), "hidden mismatch vs reference"

    print("KERNEL_OK")
</pallas_src>

<mosaic_0001>
module attributes {stable_mosaic.version = 11 : i64} {
  func.func @_rnn_fc_kernel(%arg0: memref<8x2x1xf32, #tpu.memory_space<vmem>>, %arg1: memref<2x32xf32, #tpu.memory_space<vmem>>, %arg2: memref<1x1x32xf32, #tpu.memory_space<vmem>>, %arg3: memref<32x32xf32, #tpu.memory_space<vmem>>, %arg4: memref<1x1x32xf32, #tpu.memory_space<vmem>>, %arg5: memref<1x1x32xf32, #tpu.memory_space<vmem>>, %arg6: memref<1x1xf32, #tpu.memory_space<vmem>>, %arg7: memref<8x2xf32, #tpu.memory_space<vmem>>, %arg8: memref<2x32xf32, #tpu.memory_space<vmem>>, %arg9: memref<8x2x32xf32, #tpu.memory_space<vmem>>, %arg10: memref<8x2x32xf32, #tpu.memory_space<vmem>>) attributes {dimension_semantics = [], scalar_prefetch = 0 : i64, scratch_operands = 2 : i64, tpu.core_type = #tpu.core_type<tc>} {
    %c0 = arith.constant 0 : index
    %c0_0 = arith.constant 0 : index
    %c0_1 = arith.constant 0 : index
    %0 = vector.load %arg0[%c0, %c0_0, %c0_1] : memref<8x2x1xf32, #tpu.memory_space<vmem>>, vector<8x2x1xf32>
    %c0_2 = arith.constant 0 : index
    %c0_3 = arith.constant 0 : index
    %c0_4 = arith.constant 0 : index
    %1 = vector.load %arg2[%c0_2, %c0_3, %c0_4] : memref<1x1x32xf32, #tpu.memory_space<vmem>>, vector<1x1x32xf32>
    %2 = vector.broadcast %0 : vector<8x2x1xf32> to vector<8x2x32xf32>
    %3 = vector.broadcast %1 : vector<1x1x32xf32> to vector<8x2x32xf32>
    %4 = arith.mulf %2, %3 : vector<8x2x32xf32>
    %c0_5 = arith.constant 0 : index
    %c0_6 = arith.constant 0 : index
    %c0_7 = arith.constant 0 : index
    %5 = vector.load %arg4[%c0_5, %c0_6, %c0_7] : memref<1x1x32xf32, #tpu.memory_space<vmem>>, vector<1x1x32xf32>
    %6 = vector.broadcast %5 : vector<1x1x32xf32> to vector<8x2x32xf32>
    %7 = arith.addf %4, %6 : vector<8x2x32xf32>
    %c0_8 = arith.constant 0 : index
    %c0_9 = arith.constant 0 : index
    %c0_10 = arith.constant 0 : index
    %8 = vector.load %arg9[%c0_8, %c0_9, %c0_10] : memref<8x2x32xf32, #tpu.memory_space<vmem>>, vector<8x2x32xf32>
    tpu.vector_store %arg9[%c0_8, %c0_9, %c0_10], %7 {strides = array<i32>} : memref<8x2x32xf32, #tpu.memory_space<vmem>>, vector<8x2x32xf32>,
    %c0_11 = arith.constant 0 : index
    %c0_12 = arith.constant 0 : index
    %9 = vector.load %arg1[%c0_11, %c0_12] : memref<2x32xf32, #tpu.memory_space<vmem>>, vector<2x32xf32>
    %c0_i32 = arith.constant 0 : i32
    %10 = arith.index_cast %c0_i32 : i32 to index
    %c0_13 = arith.constant 0 : index
    %c0_14 = arith.constant 0 : index
    %11 = vector.load %arg9[%10, %c0_13, %c0_14] : memref<8x2x32xf32, #tpu.memory_space<vmem>>, vector<1x2x32xf32>
    %12 = vector.shape_cast %11 : vector<1x2x32xf32> to vector<2x32xf32>
    %c0_15 = arith.constant 0 : index
    %c0_16 = arith.constant 0 : index
    %13 = vector.load %arg3[%c0_15, %c0_16] : memref<32x32xf32, #tpu.memory_space<vmem>>, vector<32x32xf32>
    %cst = arith.constant dense<0.000000e+00> : vector<2x32xf32>
    %14 = tpu.matmul %9, %13, %cst {dimension_numbers = #tpu.dot_dimension_numbers<[1], [0], [0], [1], [0, 0, 1, 1], [], []>} : vector<2x32xf32>, vector<32x32xf32>, vector<2x32xf32> -> vector<2x32xf32>
    %15 = arith.addf %12, %14 : vector<2x32xf32>
    %16 = math.tanh %15 : vector<2x32xf32>
    %17 = arith.index_cast %c0_i32 : i32 to index
    %c0_17 = arith.constant 0 : index
    %c0_18 = arith.constant 0 : index
    %18 = vector.load %arg10[%17, %c0_17, %c0_18] : memref<8x2x32xf32, #tpu.memory_space<vmem>>, vector<1x2x32xf32>
    %19 = vector.shape_cast %18 : vector<1x2x32xf32> to vector<2x32xf32>
    %20 = vector.shape_cast %16 : vector<2x32xf32> to vector<1x2x32xf32>
    tpu.vector_store %arg10[%17, %c0_17, %c0_18], %20 {strides = array<i32>} : memref<8x2x32xf32, #tpu.memory_space<vmem>>, vector<1x2x32xf32>,
    %c1_i32 = arith.constant 1 : i32
    %21 = arith.index_cast %c1_i32 : i32 to index
    %c0_19 = arith.constant 0 : index
    %c0_20 = arith.constant 0 : index
    %22 = vector.load %arg9[%21, %c0_19, %c0_20] : memref<8x2x32xf32, #tpu.memory_space<vmem>>, vector<1x2x32xf32>
    %23 = vector.shape_cast %22 : vector<1x2x32xf32> to vector<2x32xf32>
    %c0_21 = arith.constant 0 : index
    %c0_22 = arith.constant 0 : index
    %24 = vector.load %arg3[%c0_21, %c0_22] : memref<32x32xf32, #tpu.memory_space<vmem>>, vector<32x32xf32>
    %cst_23 = arith.constant dense<0.000000e+00> : vector<2x32xf32>
    %25 = tpu.matmul %16, %24, %cst_23 {dimension_numbers = #tpu.dot_dimension_numbers<[1], [0], [0], [1], [0, 0, 1, 1], [], []>} : vector<2x32xf32>, vector<32x32xf32>, vector<2x32xf32> -> vector<2x32xf32>
    %26 = arith.addf %23, %25 : vector<2x32xf32>
    %27 = math.tanh %26 : vector<2x32xf32>
    %28 = arith.index_cast %c1_i32 : i32 to index
    %c0_24 = arith.constant 0 : index
    %c0_25 = arith.constant 0 : index
    %29 = vector.load %arg10[%28, %c0_24, %c0_25] : memref<8x2x32xf32, #tpu.memory_space<vmem>>, vector<1x2x32xf32>
    %30 = vector.shape_cast %29 : vector<1x2x32xf32> to vector<2x32xf32>
    %31 = vector.shape_cast %27 : vector<2x32xf32> to vector<1x2x32xf32>
    tpu.vector_store %arg10[%28, %c0_24, %c0_25], %31 {strides = array<i32>} : memref<8x2x32xf32, #tpu.memory_space<vmem>>, vector<1x2x32xf32>,
    %c2_i32 = arith.constant 2 : i32
    %32 = arith.index_cast %c2_i32 : i32 to index
    %c0_26 = arith.constant 0 : index
    %c0_27 = arith.constant 0 : index
    %33 = vector.load %arg9[%32, %c0_26, %c0_27] : memref<8x2x32xf32, #tpu.memory_space<vmem>>, vector<1x2x32xf32>
    %34 = vector.shape_cast %33 : vector<1x2x32xf32> to vector<2x32xf32>
    %c0_28 = arith.constant 0 : index
    %c0_29 = arith.constant 0 : index
    %35 = vector.load %arg3[%c0_28, %c0_29] : memref<32x32xf32, #tpu.memory_space<vmem>>, vector<32x32xf32>
    %cst_30 = arith.constant dense<0.000000e+00> : vector<2x32xf32>
    %36 = tpu.matmul %27, %35, %cst_30 {dimension_numbers = #tpu.dot_dimension_numbers<[1], [0], [0], [1], [0, 0, 1, 1], [], []>} : vector<2x32xf32>, vector<32x32xf32>, vector<2x32xf32> -> vector<2x32xf32>
    %37 = arith.addf %34, %36 : vector<2x32xf32>
    %38 = math.tanh %37 : vector<2x32xf32>
    %39 = arith.index_cast %c2_i32 : i32 to index
    %c0_31 = arith.constant 0 : index
    %c0_32 = arith.constant 0 : index
    %40 = vector.load %arg10[%39, %c0_31, %c0_32] : memref<8x2x32xf32, #tpu.memory_space<vmem>>, vector<1x2x32xf32>
    %41 = vector.shape_cast %40 : vector<1x2x32xf32> to vector<2x32xf32>
    %42 = vector.shape_cast %38 : vector<2x32xf32> to vector<1x2x32xf32>
    tpu.vector_store %arg10[%39, %c0_31, %c0_32], %42 {strides = array<i32>} : memref<8x2x32xf32, #tpu.memory_space<vmem>>, vector<1x2x32xf32>,
    %c3_i32 = arith.constant 3 : i32
    %43 = arith.index_cast %c3_i32 : i32 to index
    %c0_33 = arith.constant 0 : index
    %c0_34 = arith.constant 0 : index
    %44 = vector.load %arg9[%43, %c0_33, %c0_34] : memref<8x2x32xf32, #tpu.memory_space<vmem>>, vector<1x2x32xf32>
    %45 = vector.shape_cast %44 : vector<1x2x32xf32> to vector<2x32xf32>
    %c0_35 = arith.constant 0 : index
    %c0_36 = arith.constant 0 : index
    %46 = vector.load %arg3[%c0_35, %c0_36] : memref<32x32xf32, #tpu.memory_space<vmem>>, vector<32x32xf32>
    %cst_37 = arith.constant dense<0.000000e+00> : vector<2x32xf32>
    %47 = tpu.matmul %38, %46, %cst_37 {dimension_numbers = #tpu.dot_dimension_numbers<[1], [0], [0], [1], [0, 0, 1, 1], [], []>} : vector<2x32xf32>, vector<32x32xf32>, vector<2x32xf32> -> vector<2x32xf32>
    %48 = arith.addf %45, %47 : vector<2x32xf32>
    %49 = math.tanh %48 : vector<2x32xf32>
    %50 = arith.index_cast %c3_i32 : i32 to index
    %c0_38 = arith.constant 0 : index
    %c0_39 = arith.constant 0 : index
    %51 = vector.load %arg10[%50, %c0_38, %c0_39] : memref<8x2x32xf32, #tpu.memory_space<vmem>>, vector<1x2x32xf32>
    %52 = vector.shape_cast %51 : vector<1x2x32xf32> to vector<2x32xf32>
    %53 = vector.shape_cast %49 : vector<2x32xf32> to vector<1x2x32xf32>
    tpu.vector_store %arg10[%50, %c0_38, %c0_39], %53 {strides = array<i32>} : memref<8x2x32xf32, #tpu.memory_space<vmem>>, vector<1x2x32xf32>,
    %c4_i32 = arith.constant 4 : i32
    %54 = arith.index_cast %c4_i32 : i32 to index
    %c0_40 = arith.constant 0 : index
    %c0_41 = arith.constant 0 : index
    %55 = vector.load %arg9[%54, %c0_40, %c0_41] : memref<8x2x32xf32, #tpu.memory_space<vmem>>, vector<1x2x32xf32>
    %56 = vector.shape_cast %55 : vector<1x2x32xf32> to vector<2x32xf32>
    %c0_42 = arith.constant 0 : index
    %c0_43 = arith.constant 0 : index
    %57 = vector.load %arg3[%c0_42, %c0_43] : memref<32x32xf32, #tpu.memory_space<vmem>>, vector<32x32xf32>
    %cst_44 = arith.constant dense<0.000000e+00> : vector<2x32xf32>
    %58 = tpu.matmul %49, %57, %cst_44 {dimension_numbers = #tpu.dot_dimension_numbers<[1], [0], [0], [1], [0, 0, 1, 1], [], []>} : vector<2x32xf32>, vector<32x32xf32>, vector<2x32xf32> -> vector<2x32xf32>
    %59 = arith.addf %56, %58 : vector<2x32xf32>
    %60 = math.tanh %59 : vector<2x32xf32>
    %61 = arith.index_cast %c4_i32 : i32 to index
    %c0_45 = arith.constant 0 : index
    %c0_46 = arith.constant 0 : index
    %62 = vector.load %arg10[%61, %c0_45, %c0_46] : memref<8x2x32xf32, #tpu.memory_space<vmem>>, vector<1x2x32xf32>
    %63 = vector.shape_cast %62 : vector<1x2x32xf32> to vector<2x32xf32>
    %64 = vector.shape_cast %60 : vector<2x32xf32> to vector<1x2x32xf32>
    tpu.vector_store %arg10[%61, %c0_45, %c0_46], %64 {strides = array<i32>} : memref<8x2x32xf32, #tpu.memory_space<vmem>>, vector<1x2x32xf32>,
    %c5_i32 = arith.constant 5 : i32
    %65 = arith.index_cast %c5_i32 : i32 to index
    %c0_47 = arith.constant 0 : index
    %c0_48 = arith.constant 0 : index
    %66 = vector.load %arg9[%65, %c0_47, %c0_48] : memref<8x2x32xf32, #tpu.memory_space<vmem>>, vector<1x2x32xf32>
    %67 = vector.shape_cast %66 : vector<1x2x32xf32> to vector<2x32xf32>
    %c0_49 = arith.constant 0 : index
    %c0_50 = arith.constant 0 : index
    %68 = vector.load %arg3[%c0_49, %c0_50] : memref<32x32xf32, #tpu.memory_space<vmem>>, vector<32x32xf32>
    %cst_51 = arith.constant dense<0.000000e+00> : vector<2x32xf32>
    %69 = tpu.matmul %60, %68, %cst_51 {dimension_numbers = #tpu.dot_dimension_numbers<[1], [0], [0], [1], [0, 0, 1, 1], [], []>} : vector<2x32xf32>, vector<32x32xf32>, vector<2x32xf32> -> vector<2x32xf32>
    %70 = arith.addf %67, %69 : vector<2x32xf32>
    %71 = math.tanh %70 : vector<2x32xf32>
    %72 = arith.index_cast %c5_i32 : i32 to index
    %c0_52 = arith.constant 0 : index
    %c0_53 = arith.constant 0 : index
    %73 = vector.load %arg10[%72, %c0_52, %c0_53] : memref<8x2x32xf32, #tpu.memory_space<vmem>>, vector<1x2x32xf32>
    %74 = vector.shape_cast %73 : vector<1x2x32xf32> to vector<2x32xf32>
    %75 = vector.shape_cast %71 : vector<2x32xf32> to vector<1x2x32xf32>
    tpu.vector_store %arg10[%72, %c0_52, %c0_53], %75 {strides = array<i32>} : memref<8x2x32xf32, #tpu.memory_space<vmem>>, vector<1x2x32xf32>,
    %c6_i32 = arith.constant 6 : i32
    %76 = arith.index_cast %c6_i32 : i32 to index
    %c0_54 = arith.constant 0 : index
    %c0_55 = arith.constant 0 : index
    %77 = vector.load %arg9[%76, %c0_54, %c0_55] : memref<8x2x32xf32, #tpu.memory_space<vmem>>, vector<1x2x32xf32>
    %78 = vector.shape_cast %77 : vector<1x2x32xf32> to vector<2x32xf32>
    %c0_56 = arith.constant 0 : index
    %c0_57 = arith.constant 0 : index
    %79 = vector.load %arg3[%c0_56, %c0_57] : memref<32x32xf32, #tpu.memory_space<vmem>>, vector<32x32xf32>
    %cst_58 = arith.constant dense<0.000000e+00> : vector<2x32xf32>
    %80 = tpu.matmul %71, %79, %cst_58 {dimension_numbers = #tpu.dot_dimension_numbers<[1], [0], [0], [1], [0, 0, 1, 1], [], []>} : vector<2x32xf32>, vector<32x32xf32>, vector<2x32xf32> -> vector<2x32xf32>
    %81 = arith.addf %78, %80 : vector<2x32xf32>
    %82 = math.tanh %81 : vector<2x32xf32>
    %83 = arith.index_cast %c6_i32 : i32 to index
    %c0_59 = arith.constant 0 : index
    %c0_60 = arith.constant 0 : index
    %84 = vector.load %arg10[%83, %c0_59, %c0_60] : memref<8x2x32xf32, #tpu.memory_space<vmem>>, vector<1x2x32xf32>
    %85 = vector.shape_cast %84 : vector<1x2x32xf32> to vector<2x32xf32>
    %86 = vector.shape_cast %82 : vector<2x32xf32> to vector<1x2x32xf32>
    tpu.vector_store %arg10[%83, %c0_59, %c0_60], %86 {strides = array<i32>} : memref<8x2x32xf32, #tpu.memory_space<vmem>>, vector<1x2x32xf32>,
    %c7_i32 = arith.constant 7 : i32
    %87 = arith.index_cast %c7_i32 : i32 to index
    %c0_61 = arith.constant 0 : index
    %c0_62 = arith.constant 0 : index
    %88 = vector.load %arg9[%87, %c0_61, %c0_62] : memref<8x2x32xf32, #tpu.memory_space<vmem>>, vector<1x2x32xf32>
    %89 = vector.shape_cast %88 : vector<1x2x32xf32> to vector<2x32xf32>
    %c0_63 = arith.constant 0 : index
    %c0_64 = arith.constant 0 : index
    %90 = vector.load %arg3[%c0_63, %c0_64] : memref<32x32xf32, #tpu.memory_space<vmem>>, vector<32x32xf32>
    %cst_65 = arith.constant dense<0.000000e+00> : vector<2x32xf32>
    %91 = tpu.matmul %82, %90, %cst_65 {dimension_numbers = #tpu.dot_dimension_numbers<[1], [0], [0], [1], [0, 0, 1, 1], [], []>} : vector<2x32xf32>, vector<32x32xf32>, vector<2x32xf32> -> vector<2x32xf32>
    %92 = arith.addf %89, %91 : vector<2x32xf32>
    %93 = math.tanh %92 : vector<2x32xf32>
    %94 = arith.index_cast %c7_i32 : i32 to index
    %c0_66 = arith.constant 0 : index
    %c0_67 = arith.constant 0 : index
    %95 = vector.load %arg10[%94, %c0_66, %c0_67] : memref<8x2x32xf32, #tpu.memory_space<vmem>>, vector<1x2x32xf32>
    %96 = vector.shape_cast %95 : vector<1x2x32xf32> to vector<2x32xf32>
    %97 = vector.shape_cast %93 : vector<2x32xf32> to vector<1x2x32xf32>
    tpu.vector_store %arg10[%94, %c0_66, %c0_67], %97 {strides = array<i32>} : memref<8x2x32xf32, #tpu.memory_space<vmem>>, vector<1x2x32xf32>,
    %c8_i32 = arith.constant 8 : i32
    %c0_68 = arith.constant 0 : index
    %c0_69 = arith.constant 0 : index
    %98 = vector.load %arg8[%c0_68, %c0_69] : memref<2x32xf32, #tpu.memory_space<vmem>>, vector<2x32xf32>
    tpu.vector_store %arg8[%c0_68, %c0_69], %93 {strides = array<i32>} : memref<2x32xf32, #tpu.memory_space<vmem>>, vector<2x32xf32>,
    %c0_70 = arith.constant 0 : index
    %c0_71 = arith.constant 0 : index
    %c0_72 = arith.constant 0 : index
    %99 = vector.load %arg10[%c0_70, %c0_71, %c0_72] : memref<8x2x32xf32, #tpu.memory_space<vmem>>, vector<8x2x32xf32>
    %c0_73 = arith.constant 0 : index
    %c0_74 = arith.constant 0 : index
    %c0_75 = arith.constant 0 : index
    %100 = vector.load %arg5[%c0_73, %c0_74, %c0_75] : memref<1x1x32xf32, #tpu.memory_space<vmem>>, vector<1x1x32xf32>
    %101 = vector.broadcast %100 : vector<1x1x32xf32> to vector<8x2x32xf32>
    %102 = arith.mulf %99, %101 : vector<8x2x32xf32>
    %cst_76 = arith.constant dense<0.000000e+00> : vector<8x2xf32>
    %103 = vector.multi_reduction <add>, %102, %cst_76 [2] : vector<8x2x32xf32> to vector<8x2xf32>
    %c0_77 = arith.constant 0 : index
    %c0_78 = arith.constant 0 : index
    %104 = vector.load %arg6[%c0_77, %c0_78] : memref<1x1xf32, #tpu.memory_space<vmem>>, vector<1x1xf32>
    %105 = vector.broadcast %104 : vector<1x1xf32> to vector<8x2xf32>
    %106 = arith.addf %103, %105 : vector<8x2xf32>
    %c0_79 = arith.constant 0 : index
    %c0_80 = arith.constant 0 : index
    %107 = vector.load %arg7[%c0_79, %c0_80] : memref<8x2xf32, #tpu.memory_space<vmem>>, vector<8x2xf32>
    tpu.vector_store %arg7[%c0_79, %c0_80], %106 {strides = array<i32>} : memref<8x2xf32, #tpu.memory_space<vmem>>, vector<8x2xf32>,
    return
  }
}

</mosaic_0001>

<llo_original>
// kernel: tpu_custom_call.1
$region0: #{tpu_custom_call.1}
  #allocation0 [shape = 'u32[]', space=smem, size = 0x4, offset = 0x4, fixed_abs, tag = 'smem constant byte address 0x4 - core index']
  #allocation1 [shape = 'u32[144,128]{1,0:T(1,128)}', space=vmem, size = 0x12000, scoped, tag = 'internal scratch']
  #allocation2 [shape = 'f32[8,2,32]{2,1,0:T(2,128)}', space=vmem, size = 0x2000, scoped, tag = 'scratch operand']
  #allocation3 [shape = 'f32[8,2,32]{2,1,0:T(2,128)}', space=vmem, size = 0x2000, scoped, tag = 'scratch operand']
  #allocation4 [shape = 'f32[1,1]{1,0:T(1,128)S(1)}', space=vmem, size = 0x200, scoped, tag = 'scoped memory for tpu_custom_call.1']
  %s0 = inlined_call_operand.vmem [shape: f32[8,2,1], index: 0, kind: input, shape index: {}]
  %s1 = inlined_call_operand.hbm [shape: f32[2,32], index: 1, kind: input, shape index: {}]
  %s2 = inlined_call_operand.vmem [shape: f32[1,1,32], index: 2, kind: input, shape index: {}]
  %s3 = inlined_call_operand.vmem [shape: f32[32,32], index: 3, kind: input, shape index: {}]
  %s4 = inlined_call_operand.vmem [shape: f32[1,1,32], index: 4, kind: input, shape index: {}]
  %s5 = inlined_call_operand.vmem [shape: f32[1,1,32], index: 5, kind: input, shape index: {}]
  %s6 = inlined_call_operand.<no memory space> [shape: f32[1,1], index: 6, kind: input, shape index: {}]
  %s7 = inlined_call_operand.vmem [shape: f32[8,2], index: 7, kind: output, shape index: {0}]
  %s8 = inlined_call_operand.hbm [shape: f32[2,32], index: 8, kind: output, shape index: {1}]
  %9 = xla_tuple %s7, %s8
  %s10 = sld [smem:[#allocation0]]
  $region50: #{tpu_custom_call.1} parent=0
    _
  %s12 = ssub.s32 1, %s10
  %s13 = scalar_select 0, %s12, %s10
  %v14 = vstv %s6
  %15 = vst [vmem:[#allocation4] sm:$0x1] %v14
  $region1: #{tpu_custom_call.1} parent=0
    #allocation5 [shape = 'u8[1024]{0}', space=vmem, size = 0x400, scoped, tag = 'input window, operand 1, single buffered']
    #allocation6 [shape = 's32[1]{0}', space=sflag, size = 0x4, scoped, tag = 'scoped memory for tpu_custom_call.1']
    #allocation7 [shape = 's32[1]{0}', space=sflag, size = 0x4, scoped, tag = 'scoped memory for tpu_custom_call.1']
    #allocation8 [shape = 'u8[1024]{0}', space=vmem, size = 0x400, scoped, tag = 'output window, operand 1, single buffered']
    %16 = vsyncpa [#allocation6], 0
    %17 = vsyncpa [#allocation7], 0
    // Predicated region
    $region2: #{tpu_custom_call.1} parent=1 // pred_check
      _
    $region3: #{tpu_custom_call.1} parent=1 // pred_check_branch
      %19 = sbr.rel (0) target = $region5
    $region4: #{tpu_custom_call.1} parent=1 // pred_region
      _
    $region5: #{tpu_custom_call.1} parent=1 // pred_fallthru
      _
    // Predicated region
    $region6: #{tpu_custom_call.1} parent=1 // pred_check
      _
    $region7: #{tpu_custom_call.1} parent=1 // pred_check_branch
      %21 = sbr.rel (0) target = $region9
    $region8: #{tpu_custom_call.1} parent=1 // pred_region
      %s23 = ssub.s32 32, 32
      %24 = vsyncadd [#allocation6], %s23
      %s26 = sshll.u32 [#allocation5], 4
      %s27 = int_to_ptr.vmem [resolvable:$true] %s26
      %29 = dma.hbm_to_vmem [thread:$0]  %s1, 32, %s27, [#allocation6]
    $region9: #{tpu_custom_call.1} parent=1 // pred_fallthru
      _
    // Predicated region
    $region10: #{tpu_custom_call.1} parent=1 // pred_check
      _
    $region11: #{tpu_custom_call.1} parent=1 // pred_check_branch
      %31 = sbr.rel (0) target = $region13
    $region12: #{tpu_custom_call.1} parent=1 // pred_region
      _
    $region13: #{tpu_custom_call.1} parent=1 // pred_fallthru
      _
    // Predicated region
    $region14: #{tpu_custom_call.1} parent=1 // pred_check
      _
    $region15: #{tpu_custom_call.1} parent=1 // pred_check_branch
      %33 = sbr.rel (0) target = $region17
    $region16: #{tpu_custom_call.1} parent=1 // pred_region
      _
    $region17: #{tpu_custom_call.1} parent=1 // pred_fallthru
      _
    // Predicated region
    $region18: #{tpu_custom_call.1} parent=1 // pred_check
      _
    $region19: #{tpu_custom_call.1} parent=1 // pred_check_branch
      %35 = sbr.rel (0) target = $region21
    $region20: #{tpu_custom_call.1} parent=1 // pred_region
      _
    $region21: #{tpu_custom_call.1} parent=1 // pred_fallthru
      _
    // Predicated region
    $region22: #{tpu_custom_call.1} parent=1 // pred_check
      _
    $region23: #{tpu_custom_call.1} parent=1 // pred_check_branch
      %37 = sbr.rel (0) target = $region25
    $region24: #{tpu_custom_call.1} parent=1 // pred_region
      _
    $region25: #{tpu_custom_call.1} parent=1 // pred_fallthru
      _
    // Predicated region
    $region26: #{tpu_custom_call.1} parent=1 // pred_check
      _
    $region27: #{tpu_custom_call.1} parent=1 // pred_check_branch
      %39 = sbr.rel (0) target = $region29
    $region28: #{tpu_custom_call.1} parent=1 // pred_region
      _
    $region29: #{tpu_custom_call.1} parent=1 // pred_fallthru
      _
    // Predicated region
    $region30: #{tpu_custom_call.1} parent=1 // pred_check
      _
    $region31: #{tpu_custom_call.1} parent=1 // pred_check_branch
      %41 = sbr.rel (0) target = $region33
    $region32: #{tpu_custom_call.1} parent=1 // pred_region
      %42 = dma.done [#allocation6], 32
    $region33: #{tpu_custom_call.1} parent=1 // pred_fallthru
      _
    %v43 = vld [vmem:[%s0] sm:$0x3]
    %v44 = vld [vmem:[%s0 + $0x2] sm:$0x3]
    %v45 = vld [vmem:[%s0 + $0x4] sm:$0x3]
    %v46 = vld [vmem:[%s0 + $0x6] sm:$0x3]
    %v47 = vld [vmem:[%s0 + $0x8] sm:$0x3]
    %v48 = vld [vmem:[%s0 + $0xa] sm:$0x3]
    %v49 = vld [vmem:[%s0 + $0xc] sm:$0x3]
    %v50 = vld [vmem:[%s0 + $0xe] sm:$0x3]
    %v51 = vld [vmem:[%s2] sm:$0x1]
    %53 = vset.pattern.permute.xlu0 0
    %54 = vperm.xlu0 %53, %v43
    %v55 = vpop.permute.xlu0 %54
    %58 = vset.pattern.permute.xlu0 0
    %59 = vperm.xlu0 %58, %v44
    %v60 = vpop.permute.xlu0 %59
    %63 = vset.pattern.permute.xlu0 0
    %64 = vperm.xlu0 %63, %v45
    %v65 = vpop.permute.xlu0 %64
    %68 = vset.pattern.permute.xlu0 0
    %69 = vperm.xlu0 %68, %v46
    %v70 = vpop.permute.xlu0 %69
    %73 = vset.pattern.permute.xlu0 0
    %74 = vperm.xlu0 %73, %v47
    %v75 = vpop.permute.xlu0 %74
    %78 = vset.pattern.permute.xlu0 0
    %79 = vperm.xlu0 %78, %v48
    %v80 = vpop.permute.xlu0 %79
    %83 = vset.pattern.permute.xlu0 0
    %84 = vperm.xlu0 %83, %v49
    %v85 = vpop.permute.xlu0 %84
    %88 = vset.pattern.permute.xlu0 0
    %89 = vperm.xlu0 %88, %v50
    %v90 = vpop.permute.xlu0 %89
    %v93 = vlaneseq
    %v94 = vshrl.u32 %v93, 7
    %v95 = vsub.s32 0, %v94
    %v96 = vrot.slane %v51, %v95
    %v98 = vmul.f32 %v55, %v96
    %v99 = vmul.f32 %v60, %v96
    %v100 = vmul.f32 %v65, %v96
    %v101 = vmul.f32 %v70, %v96
    %v102 = vmul.f32 %v75, %v96
    %v103 = vmul.f32 %v80, %v96
    %v104 = vmul.f32 %v85, %v96
    %v105 = vmul.f32 %v90, %v96
    %v106 = vld [vmem:[%s4] sm:$0x1]
    %v108 = vlaneseq
    %v109 = vshrl.u32 %v108, 7
    %v110 = vsub.s32 0, %v109
    %v111 = vrot.slane %v106, %v110
    %v113 = vadd.f32 %v98, %v111
    %v114 = vadd.f32 %v99, %v111
    %v115 = vadd.f32 %v100, %v111
    %v116 = vadd.f32 %v101, %v111
    %v117 = vadd.f32 %v102, %v111
    %v118 = vadd.f32 %v103, %v111
    %v119 = vadd.f32 %v104, %v111
    %v120 = vadd.f32 %v105, %v111
    %vm121 = vcmask 254976
    %122 = vst.msk [vmem:[#allocation2] sm:$0x3] %vm121, %v113
    %123 = vst.msk [vmem:[#allocation2 + $0x2] sm:$0x3] %vm121, %v114
    %124 = vst.msk [vmem:[#allocation2 + $0x4] sm:$0x3] %vm121, %v115
    %125 = vst.msk [vmem:[#allocation2 + $0x6] sm:$0x3] %vm121, %v116
    %126 = vst.msk [vmem:[#allocation2 + $0x8] sm:$0x3] %vm121, %v117
    %127 = vst.msk [vmem:[#allocation2 + $0xa] sm:$0x3] %vm121, %v118
    %128 = vst.msk [vmem:[#allocation2 + $0xc] sm:$0x3] %vm121, %v119
    %129 = vst.msk [vmem:[#allocation2 + $0xe] sm:$0x3] %vm121, %v120
    %v130 = vld [vmem:[#allocation5] sm:$0x3]
    %v131 = vld [vmem:[#allocation2] sm:$0x3]
    %v132 = vld [vmem:[%s3] sm:$0xff]
    %v133 = vld [vmem:[%s3 + $0x8] sm:$0xff]
    %v134 = vld [vmem:[%s3 + $0x10] sm:$0xff]
    %v135 = vld [vmem:[%s3 + $0x18] sm:$0xff]
    %vm136 = vcmask 261120
    %v138 = vsel %vm136, %v130, 0
    %140 = vmatprep.subr.mxu0 0.0
    %141 = vmatpush1.msra.mxu0 %v132
    %142 = vmatprep.subr.mxu0 0.0
    %143 = vmatpush1.msra.mxu0 %v133
    %144 = vmatprep.subr.mxu0 0.0
    %145 = vmatpush1.msra.mxu0 %v134
    %146 = vmatprep.subr.mxu0 0.0
    %147 = vmatpush1.msra.mxu0 %v135
    %148 = vmatprep.subr.mxu0 0.0
    %149 = vmatpush1.msra.mxu0 0.0
    %150 = vmatprep.subr.mxu0 0.0
    %151 = vmatpush1.msra.mxu0 0.0
    %152 = vmatprep.subr.mxu0 0.0
    %153 = vmatpush1.msra.mxu0 0.0
    %154 = vmatprep.subr.mxu0 0.0
    %155 = vmatpush1.msra.mxu0 0.0
    %156 = vmatprep.subr.mxu0 0.0
    %157 = vmatpush1.msra.mxu0 0.0
    %158 = vmatprep.subr.mxu0 0.0
    %159 = vmatpush1.msra.mxu0 0.0
    %160 = vmatprep.subr.mxu0 0.0
    %161 = vmatpush1.msra.mxu0 0.0
    %162 = vmatprep.subr.mxu0 0.0
    %163 = vmatpush1.msra.mxu0 0.0
    %164 = vmatprep.subr.mxu0 0.0
    %165 = vmatpush1.msra.mxu0 0.0
    %166 = vmatprep.subr.mxu0 0.0
    %167 = vmatpush1.msra.mxu0 0.0
    %168 = vmatprep.subr.mxu0 0.0
    %169 = vmatpush1.msra.mxu0 0.0
    %170 = vmatprep.subr.mxu0 0.0
    %171 = vmatpush1.msra.mxu0 0.0
    %172 = vmatprep.subr.mxu0 0.0
    %173 = vmatpush1.msra.mxu0 0.0
    %174 = vmatprep.subr.mxu0 0.0
    %175 = vmatpush1.msra.mxu0 0.0
    %176 = vmatprep.subr.mxu0 0.0
    %177 = vmatpush1.msra.mxu0 0.0
    %178 = vmatprep.subr.mxu0 0.0
    %179 = vmatpush1.msra.mxu0 0.0
    %180 = vmatprep.subr.mxu0 0.0
    %181 = vmatpush1.msra.mxu0 0.0
    %182 = vmatprep.subr.mxu0 0.0
    %183 = vmatpush1.msra.mxu0 0.0
    %184 = vmatprep.subr.mxu0 0.0
    %185 = vmatpush1.msra.mxu0 0.0
    %186 = vmatprep.subr.mxu0 0.0
    %187 = vmatpush1.msra.mxu0 0.0
    %188 = vmatprep.subr.mxu0 0.0
    %189 = vmatpush1.msra.mxu0 0.0
    %190 = vmatprep.subr.mxu0 0.0
    %191 = vmatpush1.msra.mxu0 0.0
    %192 = vmatprep.subr.mxu0 0.0
    %193 = vmatpush1.msra.mxu0 0.0
    %194 = vmatprep.subr.mxu0 0.0
    %195 = vmatpush1.msra.mxu0 0.0
    %196 = vmatprep.subr.mxu0 0.0
    %197 = vmatpush1.msra.mxu0 0.0
    %198 = vmatprep.subr.mxu0 0.0
    %199 = vmatpush1.msra.mxu0 0.0
    %200 = vmatprep.subr.mxu0 0.0
    %201 = vmatpush1.msra.mxu0 0.0
    %202 = vmatprep.subr.mxu0 0.0
    %203 = vmatpush1.msra.mxu0 0.0
    %204 = vmatprep.mubr.f32.mxu0 0.0
    %205 = vmatmul.mubr.f32.gmra.mrb[0].mxu0 %v138
    %v206 = vpop.f32.mrb[0].mxu0
    %v207 = vadd.f32 0.0, %v206
    %v208 = vpop.f32.mrb[0].mxu0
    %209 = vdwg.mxu0
    %v210 = vadd.f32 %v131, %v207
    %v211 = vtanh.pop %v210
    %212 = vst.msk [vmem:[#allocation3] sm:$0x3] %vm121, %v211
    %s213 = scalar_lea.vmem [#allocation2], 2
    %v214 = vld [vmem:[%s213] sm:$0x3]
    %v215 = vld [vmem:[%s3] sm:$0xff]
    %v216 = vld [vmem:[%s3 + $0x8] sm:$0xff]
    %v217 = vld [vmem:[%s3 + $0x10] sm:$0xff]
    %v218 = vld [vmem:[%s3 + $0x18] sm:$0xff]
    %v220 = vsel %vm136, %v211, 0
    %222 = vmatprep.subr.mxu0 0.0
    %223 = vmatpush1.msra.mxu0 %v215
    %224 = vmatprep.subr.mxu0 0.0
    %225 = vmatpush1.msra.mxu0 %v216
    %226 = vmatprep.subr.mxu0 0.0
    %227 = vmatpush1.msra.mxu0 %v217
    %228 = vmatprep.subr.mxu0 0.0
    %229 = vmatpush1.msra.mxu0 %v218
    %230 = vmatprep.subr.mxu0 0.0
    %231 = vmatpush1.msra.mxu0 0.0
    %232 = vmatprep.subr.mxu0 0.0
    %233 = vmatpush1.msra.mxu0 0.0
    %234 = vmatprep.subr.mxu0 0.0
    %235 = vmatpush1.msra.mxu0 0.0
    %236 = vmatprep.subr.mxu0 0.0
    %237 = vmatpush1.msra.mxu0 0.0
    %238 = vmatprep.subr.mxu0 0.0
    %239 = vmatpush1.msra.mxu0 0.0
    %240 = vmatprep.subr.mxu0 0.0
    %241 = vmatpush1.msra.mxu0 0.0
    %242 = vmatprep.subr.mxu0 0.0
    %243 = vmatpush1.msra.mxu0 0.0
    %244 = vmatprep.subr.mxu0 0.0
    %245 = vmatpush1.msra.mxu0 0.0
    %246 = vmatprep.subr.mxu0 0.0
    %247 = vmatpush1.msra.mxu0 0.0
    %248 = vmatprep.subr.mxu0 0.0
    %249 = vmatpush1.msra.mxu0 0.0
    %250 = vmatprep.subr.mxu0 0.0
    %251 = vmatpush1.msra.mxu0 0.0
    %252 = vmatprep.subr.mxu0 0.0
    %253 = vmatpush1.msra.mxu0 0.0
    %254 = vmatprep.subr.mxu0 0.0
    %255 = vmatpush1.msra.mxu0 0.0
    %256 = vmatprep.subr.mxu0 0.0
    %257 = vmatpush1.msra.mxu0 0.0
    %258 = vmatprep.subr.mxu0 0.0
    %259 = vmatpush1.msra.mxu0 0.0
    %260 = vmatprep.subr.mxu0 0.0
    %261 = vmatpush1.msra.mxu0 0.0
    %262 = vmatprep.subr.mxu0 0.0
    %263 = vmatpush1.msra.mxu0 0.0
    %264 = vmatprep.subr.mxu0 0.0
    %265 = vmatpush1.msra.mxu0 0.0
    %266 = vmatprep.subr.mxu0 0.0
    %267 = vmatpush1.msra.mxu0 0.0
    %268 = vmatprep.subr.mxu0 0.0
    %269 = vmatpush1.msra.mxu0 0.0
    %270 = vmatprep.subr.mxu0 0.0
    %271 = vmatpush1.msra.mxu0 0.0
    %272 = vmatprep.subr.mxu0 0.0
    %273 = vmatpush1.msra.mxu0 0.0
    %274 = vmatprep.subr.mxu0 0.0
    %275 = vmatpush1.msra.mxu0 0.0
    %276 = vmatprep.subr.mxu0 0.0
    %277 = vmatpush1.msra.mxu0 0.0
    %278 = vmatprep.subr.mxu0 0.0
    %279 = vmatpush1.msra.mxu0 0.0
    %280 = vmatprep.subr.mxu0 0.0
    %281 = vmatpush1.msra.mxu0 0.0
    %282 = vmatprep.subr.mxu0 0.0
    %283 = vmatpush1.msra.mxu0 0.0
    %284 = vmatprep.subr.mxu0 0.0
    %285 = vmatpush1.msra.mxu0 0.0
    %286 = vmatprep.mubr.f32.mxu0 0.0
    %287 = vmatmul.mubr.f32.gmra.mrb[0].mxu0 %v220
    %v288 = vpop.f32.mrb[0].mxu0
    %v289 = vadd.f32 0.0, %v288
    %v290 = vpop.f32.mrb[0].mxu0
    %291 = vdwg.mxu0
    %v292 = vadd.f32 %v214, %v289
    %v293 = vtanh.pop %v292
    %s294 = scalar_lea.vmem [#allocation3], 2
    %295 = vst.msk [vmem:[%s294] sm:$0x3] %vm121, %v293
    %s296 = scalar_lea.vmem [#allocation2], 4
    %v297 = vld [vmem:[%s296] sm:$0x3]
    %v298 = vld [vmem:[%s3] sm:$0xff]
    %v299 = vld [vmem:[%s3 + $0x8] sm:$0xff]
    %v300 = vld [vmem:[%s3 + $0x10] sm:$0xff]
    %v301 = vld [vmem:[%s3 + $0x18] sm:$0xff]
    %v303 = vsel %vm136, %v293, 0
    %305 = vmatprep.subr.mxu0 0.0
    %306 = vmatpush1.msra.mxu0 %v298
    %307 = vmatprep.subr.mxu0 0.0
    %308 = vmatpush1.msra.mxu0 %v299
    %309 = vmatprep.subr.mxu0 0.0
    %310 = vmatpush1.msra.mxu0 %v300
    %311 = vmatprep.subr.mxu0 0.0
    %312 = vmatpush1.msra.mxu0 %v301
    %313 = vmatprep.subr.mxu0 0.0
    %314 = vmatpush1.msra.mxu0 0.0
    %315 = vmatprep.subr.mxu0 0.0
    %316 = vmatpush1.msra.mxu0 0.0
    %317 = vmatprep.subr.mxu0 0.0
    %318 = vmatpush1.msra.mxu0 0.0
    %319 = vmatprep.subr.mxu0 0.0
    %320 = vmatpush1.msra.mxu0 0.0
    %321 = vmatprep.subr.mxu0 0.0
    %322 = vmatpush1.msra.mxu0 0.0
    %323 = vmatprep.subr.mxu0 0.0
    %324 = vmatpush1.msra.mxu0 0.0
    %325 = vmatprep.subr.mxu0 0.0
    %326 = vmatpush1.msra.mxu0 0.0
    %327 = vmatprep.subr.mxu0 0.0
    %328 = vmatpush1.msra.mxu0 0.0
    %329 = vmatprep.subr.mxu0 0.0
    %330 = vmatpush1.msra.mxu0 0.0
    %331 = vmatprep.subr.mxu0 0.0
    %332 = vmatpush1.msra.mxu0 0.0
    %333 = vmatprep.subr.mxu0 0.0
    %334 = vmatpush1.msra.mxu0 0.0
    %335 = vmatprep.subr.mxu0 0.0
    %336 = vmatpush1.msra.mxu0 0.0
    %337 = vmatprep.subr.mxu0 0.0
    %338 = vmatpush1.msra.mxu0 0.0
    %339 = vmatprep.subr.mxu0 0.0
    %340 = vmatpush1.msra.mxu0 0.0
    %341 = vmatprep.subr.mxu0 0.0
    %342 = vmatpush1.msra.mxu0 0.0
    %343 = vmatprep.subr.mxu0 0.0
    %344 = vmatpush1.msra.mxu0 0.0
    %345 = vmatprep.subr.mxu0 0.0
    %346 = vmatpush1.msra.mxu0 0.0
    %347 = vmatprep.subr.mxu0 0.0
    %348 = vmatpush1.msra.mxu0 0.0
    %349 = vmatprep.subr.mxu0 0.0
    %350 = vmatpush1.msra.mxu0 0.0
    %351 = vmatprep.subr.mxu0 0.0
    %352 = vmatpush1.msra.mxu0 0.0
    %353 = vmatprep.subr.mxu0 0.0
    %354 = vmatpush1.msra.mxu0 0.0
    %355 = vmatprep.subr.mxu0 0.0
    %356 = vmatpush1.msra.mxu0 0.0
    %357 = vmatprep.subr.mxu0 0.0
    %358 = vmatpush1.msra.mxu0 0.0
    %359 = vmatprep.subr.mxu0 0.0
    %360 = vmatpush1.msra.mxu0 0.0
    %361 = vmatprep.subr.mxu0 0.0
    %362 = vmatpush1.msra.mxu0 0.0
    %363 = vmatprep.subr.mxu0 0.0
    %364 = vmatpush1.msra.mxu0 0.0
    %365 = vmatprep.subr.mxu0 0.0
    %366 = vmatpush1.msra.mxu0 0.0
    %367 = vmatprep.subr.mxu0 0.0
    %368 = vmatpush1.msra.mxu0 0.0
    %369 = vmatprep.mubr.f32.mxu0 0.0
    %370 = vmatmul.mubr.f32.gmra.mrb[0].mxu0 %v303
    %v371 = vpop.f32.mrb[0].mxu0
    %v372 = vadd.f32 0.0, %v371
    %v373 = vpop.f32.mrb[0].mxu0
    %374 = vdwg.mxu0
    %v375 = vadd.f32 %v297, %v372
    %v376 = vtanh.pop %v375
    %s377 = scalar_lea.vmem [#allocation3], 4
    %378 = vst.msk [vmem:[%s377] sm:$0x3] %vm121, %v376
    %s379 = scalar_lea.vmem [#allocation2], 6
    %v380 = vld [vmem:[%s379] sm:$0x3]
    %v381 = vld [vmem:[%s3] sm:$0xff]
    %v382 = vld [vmem:[%s3 + $0x8] sm:$0xff]
    %v383 = vld [vmem:[%s3 + $0x10] sm:$0xff]
    %v384 = vld [vmem:[%s3 + $0x18] sm:$0xff]
    %v386 = vsel %vm136, %v376, 0
    %388 = vmatprep.subr.mxu0 0.0
    %389 = vmatpush1.msra.mxu0 %v381
    %390 = vmatprep.subr.mxu0 0.0
    %391 = vmatpush1.msra.mxu0 %v382
    %392 = vmatprep.subr.mxu0 0.0
    %393 = vmatpush1.msra.mxu0 %v383
    %394 = vmatprep.subr.mxu0 0.0
    %395 = vmatpush1.msra.mxu0 %v384
    %396 = vmatprep.subr.mxu0 0.0
    %397 = vmatpush1.msra.mxu0 0.0
    %398 = vmatprep.subr.mxu0 0.0
    %399 = vmatpush1.msra.mxu0 0.0
    %400 = vmatprep.subr.mxu0 0.0
    %401 = vmatpush1.msra.mxu0 0.0
    %402 = vmatprep.subr.mxu0 0.0
    %403 = vmatpush1.msra.mxu0 0.0
    %404 = vmatprep.subr.mxu0 0.0
    %405 = vmatpush1.msra.mxu0 0.0
    %406 = vmatprep.subr.mxu0 0.0
    %407 = vmatpush1.msra.mxu0 0.0
    %408 = vmatprep.subr.mxu0 0.0
    %409 = vmatpush1.msra.mxu0 0.0
    %410 = vmatprep.subr.mxu0 0.0
    %411 = vmatpush1.msra.mxu0 0.0
    %412 = vmatprep.subr.mxu0 0.0
    %413 = vmatpush1.msra.mxu0 0.0
    %414 = vmatprep.subr.mxu0 0.0
    %415 = vmatpush1.msra.mxu0 0.0
    %416 = vmatprep.subr.mxu0 0.0
    %417 = vmatpush1.msra.mxu0 0.0
    %418 = vmatprep.subr.mxu0 0.0
    %419 = vmatpush1.msra.mxu0 0.0
    %420 = vmatprep.subr.mxu0 0.0
    %421 = vmatpush1.msra.mxu0 0.0
    %422 = vmatprep.subr.mxu0 0.0
    %423 = vmatpush1.msra.mxu0 0.0
    %424 = vmatprep.subr.mxu0 0.0
    %425 = vmatpush1.msra.mxu0 0.0
    %426 = vmatprep.subr.mxu0 0.0
    %427 = vmatpush1.msra.mxu0 0.0
    %428 = vmatprep.subr.mxu0 0.0
    %429 = vmatpush1.msra.mxu0 0.0
    %430 = vmatprep.subr.mxu0 0.0
    %431 = vmatpush1.msra.mxu0 0.0
    %432 = vmatprep.subr.mxu0 0.0
    %433 = vmatpush1.msra.mxu0 0.0
    %434 = vmatprep.subr.mxu0 0.0
    %435 = vmatpush1.msra.mxu0 0.0
    %436 = vmatprep.subr.mxu0 0.0
    %437 = vmatpush1.msra.mxu0 0.0
    %438 = vmatprep.subr.mxu0 0.0
    %439 = vmatpush1.msra.mxu0 0.0
    %440 = vmatprep.subr.mxu0 0.0
    %441 = vmatpush1.msra.mxu0 0.0
    %442 = vmatprep.subr.mxu0 0.0
    %443 = vmatpush1.msra.mxu0 0.0
    %444 = vmatprep.subr.mxu0 0.0
    %445 = vmatpush1.msra.mxu0 0.0
    %446 = vmatprep.subr.mxu0 0.0
    %447 = vmatpush1.msra.mxu0 0.0
    %448 = vmatprep.subr.mxu0 0.0
    %449 = vmatpush1.msra.mxu0 0.0
    %450 = vmatprep.subr.mxu0 0.0
    %451 = vmatpush1.msra.mxu0 0.0
    %452 = vmatprep.mubr.f32.mxu0 0.0
    %453 = vmatmul.mubr.f32.gmra.mrb[0].mxu0 %v386
    %v454 = vpop.f32.mrb[0].mxu0
    %v455 = vadd.f32 0.0, %v454
    %v456 = vpop.f32.mrb[0].mxu0
    %457 = vdwg.mxu0
    %v458 = vadd.f32 %v380, %v455
    %v459 = vtanh.pop %v458
    %s460 = scalar_lea.vmem [#allocation3], 6
    %461 = vst.msk [vmem:[%s460] sm:$0x3] %vm121, %v459
    %s462 = scalar_lea.vmem [#allocation2], 8
    %v463 = vld [vmem:[%s462] sm:$0x3]
    %v464 = vld [vmem:[%s3] sm:$0xff]
    %v465 = vld [vmem:[%s3 + $0x8] sm:$0xff]
    %v466 = vld [vmem:[%s3 + $0x10] sm:$0xff]
    %v467 = vld [vmem:[%s3 + $0x18] sm:$0xff]
    %v469 = vsel %vm136, %v459, 0
    %471 = vmatprep.subr.mxu0 0.0
    %472 = vmatpush1.msra.mxu0 %v464
    %473 = vmatprep.subr.mxu0 0.0
    %474 = vmatpush1.msra.mxu0 %v465
    %475 = vmatprep.subr.mxu0 0.0
    %476 = vmatpush1.msra.mxu0 %v466
    %477 = vmatprep.subr.mxu0 0.0
    %478 = vmatpush1.msra.mxu0 %v467
    %479 = vmatprep.subr.mxu0 0.0
    %480 = vmatpush1.msra.mxu0 0.0
    %481 = vmatprep.subr.mxu0 0.0
    %482 = vmatpush1.msra.mxu0 0.0
    %483 = vmatprep.subr.mxu0 0.0
    %484 = vmatpush1.msra.mxu0 0.0
    %485 = vmatprep.subr.mxu0 0.0
    %486 = vmatpush1.msra.mxu0 0.0
    %487 = vmatprep.subr.mxu0 0.0
    %488 = vmatpush1.msra.mxu0 0.0
    %489 = vmatprep.subr.mxu0 0.0
    %490 = vmatpush1.msra.mxu0 0.0
    %491 = vmatprep.subr.mxu0 0.0
    %492 = vmatpush1.msra.mxu0 0.0
    %493 = vmatprep.subr.mxu0 0.0
    %494 = vmatpush1.msra.mxu0 0.0
    %495 = vmatprep.subr.mxu0 0.0
    %496 = vmatpush1.msra.mxu0 0.0
    %497 = vmatprep.subr.mxu0 0.0
    %498 = vmatpush1.msra.mxu0 0.0
    %499 = vmatprep.subr.mxu0 0.0
    %500 = vmatpush1.msra.mxu0 0.0
    %501 = vmatprep.subr.mxu0 0.0
    %502 = vmatpush1.msra.mxu0 0.0
    %503 = vmatprep.subr.mxu0 0.0
    %504 = vmatpush1.msra.mxu0 0.0
    %505 = vmatprep.subr.mxu0 0.0
    %506 = vmatpush1.msra.mxu0 0.0
    %507 = vmatprep.subr.mxu0 0.0
    %508 = vmatpush1.msra.mxu0 0.0
    %509 = vmatprep.subr.mxu0 0.0
    %510 = vmatpush1.msra.mxu0 0.0
    %511 = vmatprep.subr.mxu0 0.0
    %512 = vmatpush1.msra.mxu0 0.0
    %513 = vmatprep.subr.mxu0 0.0
    %514 = vmatpush1.msra.mxu0 0.0
    %515 = vmatprep.subr.mxu0 0.0
    %516 = vmatpush1.msra.mxu0 0.0
    %517 = vmatprep.subr.mxu0 0.0
    %518 = vmatpush1.msra.mxu0 0.0
    %519 = vmatprep.subr.mxu0 0.0
    %520 = vmatpush1.msra.mxu0 0.0
    %521 = vmatprep.subr.mxu0 0.0
    %522 = vmatpush1.msra.mxu0 0.0
    %523 = vmatprep.subr.mxu0 0.0
    %524 = vmatpush1.msra.mxu0 0.0
    %525 = vmatprep.subr.mxu0 0.0
    %526 = vmatpush1.msra.mxu0 0.0
    %527 = vmatprep.subr.mxu0 0.0
    %528 = vmatpush1.msra.mxu0 0.0
    %529 = vmatprep.subr.mxu0 0.0
    %530 = vmatpush1.msra.mxu0 0.0
    %531 = vmatprep.subr.mxu0 0.0
    %532 = vmatpush1.msra.mxu0 0.0
    %533 = vmatprep.subr.mxu0 0.0
    %534 = vmatpush1.msra.mxu0 0.0
    %535 = vmatprep.mubr.f32.mxu0 0.0
    %536 = vmatmul.mubr.f32.gmra.mrb[0].mxu0 %v469
    %v537 = vpop.f32.mrb[0].mxu0
    %v538 = vadd.f32 0.0, %v537
    %v539 = vpop.f32.mrb[0].mxu0
    %540 = vdwg.mxu0
    %v541 = vadd.f32 %v463, %v538
    %v542 = vtanh.pop %v541
    %s543 = scalar_lea.vmem [#allocation3], 8
    %544 = vst.msk [vmem:[%s543] sm:$0x3] %vm121, %v542
    %s545 = scalar_lea.vmem [#allocation2], 10
    %v546 = vld [vmem:[%s545] sm:$0x3]
    %v547 = vld [vmem:[%s3] sm:$0xff]
    %v548 = vld [vmem:[%s3 + $0x8] sm:$0xff]
    %v549 = vld [vmem:[%s3 + $0x10] sm:$0xff]
    %v550 = vld [vmem:[%s3 + $0x18] sm:$0xff]
    %v552 = vsel %vm136, %v542, 0
    %554 = vmatprep.subr.mxu0 0.0
    %555 = vmatpush1.msra.mxu0 %v547
    %556 = vmatprep.subr.mxu0 0.0
    %557 = vmatpush1.msra.mxu0 %v548
    %558 = vmatprep.subr.mxu0 0.0
    %559 = vmatpush1.msra.mxu0 %v549
    %560 = vmatprep.subr.mxu0 0.0
    %561 = vmatpush1.msra.mxu0 %v550
    %562 = vmatprep.subr.mxu0 0.0
    %563 = vmatpush1.msra.mxu0 0.0
    %564 = vmatprep.subr.mxu0 0.0
    %565 = vmatpush1.msra.mxu0 0.0
    %566 = vmatprep.subr.mxu0 0.0
    %567 = vmatpush1.msra.mxu0 0.0
    %568 = vmatprep.subr.mxu0 0.0
    %569 = vmatpush1.msra.mxu0 0.0
    %570 = vmatprep.subr.mxu0 0.0
    %571 = vmatpush1.msra.mxu0 0.0
    %572 = vmatprep.subr.mxu0 0.0
    %573 = vmatpush1.msra.mxu0 0.0
    %574 = vmatprep.subr.mxu0 0.0
    %575 = vmatpush1.msra.mxu0 0.0
    %576 = vmatprep.subr.mxu0 0.0
    %577 = vmatpush1.msra.mxu0 0.0
    %578 = vmatprep.subr.mxu0 0.0
    %579 = vmatpush1.msra.mxu0 0.0
    %580 = vmatprep.subr.mxu0 0.0
    %581 = vmatpush1.msra.mxu0 0.0
    %582 = vmatprep.subr.mxu0 0.0
    %583 = vmatpush1.msra.mxu0 0.0
    %584 = vmatprep.subr.mxu0 0.0
    %585 = vmatpush1.msra.mxu0 0.0
    %586 = vmatprep.subr.mxu0 0.0
    %587 = vmatpush1.msra.mxu0 0.0
    %588 = vmatprep.subr.mxu0 0.0
    %589 = vmatpush1.msra.mxu0 0.0
    %590 = vmatprep.subr.mxu0 0.0
    %591 = vmatpush1.msra.mxu0 0.0
    %592 = vmatprep.subr.mxu0 0.0
    %593 = vmatpush1.msra.mxu0 0.0
    %594 = vmatprep.subr.mxu0 0.0
    %595 = vmatpush1.msra.mxu0 0.0
    %596 = vmatprep.subr.mxu0 0.0
    %597 = vmatpush1.msra.mxu0 0.0
    %598 = vmatprep.subr.mxu0 0.0
    %599 = vmatpush1.msra.mxu0 0.0
    %600 = vmatprep.subr.mxu0 0.0
    %601 = vmatpush1.msra.mxu0 0.0
    %602 = vmatprep.subr.mxu0 0.0
    %603 = vmatpush1.msra.mxu0 0.0
    %604 = vmatprep.subr.mxu0 0.0
    %605 = vmatpush1.msra.mxu0 0.0
    %606 = vmatprep.subr.mxu0 0.0
    %607 = vmatpush1.msra.mxu0 0.0
    %608 = vmatprep.subr.mxu0 0.0
    %609 = vmatpush1.msra.mxu0 0.0
    %610 = vmatprep.subr.mxu0 0.0
    %611 = vmatpush1.msra.mxu0 0.0
    %612 = vmatprep.subr.mxu0 0.0
    %613 = vmatpush1.msra.mxu0 0.0
    %614 = vmatprep.subr.mxu0 0.0
    %615 = vmatpush1.msra.mxu0 0.0
    %616 = vmatprep.subr.mxu0 0.0
    %617 = vmatpush1.msra.mxu0 0.0
    %618 = vmatprep.mubr.f32.mxu0 0.0
    %619 = vmatmul.mubr.f32.gmra.mrb[0].mxu0 %v552
    %v620 = vpop.f32.mrb[0].mxu0
    %v621 = vadd.f32 0.0, %v620
    %v622 = vpop.f32.mrb[0].mxu0
    %623 = vdwg.mxu0
    %v624 = vadd.f32 %v546, %v621
    %v625 = vtanh.pop %v624
    %s626 = scalar_lea.vmem [#allocation3], 10
    %627 = vst.msk [vmem:[%s626] sm:$0x3] %vm121, %v625
    %s628 = scalar_lea.vmem [#allocation2], 12
    %v629 = vld [vmem:[%s628] sm:$0x3]
    %v630 = vld [vmem:[%s3] sm:$0xff]
    %v631 = vld [vmem:[%s3 + $0x8] sm:$0xff]
    %v632 = vld [vmem:[%s3 + $0x10] sm:$0xff]
    %v633 = vld [vmem:[%s3 + $0x18] sm:$0xff]
    %v635 = vsel %vm136, %v625, 0
    %637 = vmatprep.subr.mxu0 0.0
    %638 = vmatpush1.msra.mxu0 %v630
    %639 = vmatprep.subr.mxu0 0.0
    %640 = vmatpush1.msra.mxu0 %v631
    %641 = vmatprep.subr.mxu0 0.0
    %642 = vmatpush1.msra.mxu0 %v632
    %643 = vmatprep.subr.mxu0 0.0
    %644 = vmatpush1.msra.mxu0 %v633
    %645 = vmatprep.subr.mxu0 0.0
    %646 = vmatpush1.msra.mxu0 0.0
    %647 = vmatprep.subr.mxu0 0.0
    %648 = vmatpush1.msra.mxu0 0.0
    %649 = vmatprep.subr.mxu0 0.0
    %650 = vmatpush1.msra.mxu0 0.0
    %651 = vmatprep.subr.mxu0 0.0
    %652 = vmatpush1.msra.mxu0 0.0
    %653 = vmatprep.subr.mxu0 0.0
    %654 = vmatpush1.msra.mxu0 0.0
    %655 = vmatprep.subr.mxu0 0.0
    %656 = vmatpush1.msra.mxu0 0.0
    %657 = vmatprep.subr.mxu0 0.0
    %658 = vmatpush1.msra.mxu0 0.0
    %659 = vmatprep.subr.mxu0 0.0
    %660 = vmatpush1.msra.mxu0 0.0
    %661 = vmatprep.subr.mxu0 0.0
    %662 = vmatpush1.msra.mxu0 0.0
    %663 = vmatprep.subr.mxu0 0.0
    %664 = vmatpush1.msra.mxu0 0.0
    %665 = vmatprep.subr.mxu0 0.0
    %666 = vmatpush1.msra.mxu0 0.0
    %667 = vmatprep.subr.mxu0 0.0
    %668 = vmatpush1.msra.mxu0 0.0
    %669 = vmatprep.subr.mxu0 0.0
    %670 = vmatpush1.msra.mxu0 0.0
    %671 = vmatprep.subr.mxu0 0.0
    %672 = vmatpush1.msra.mxu0 0.0
    %673 = vmatprep.subr.mxu0 0.0
    %674 = vmatpush1.msra.mxu0 0.0
    %675 = vmatprep.subr.mxu0 0.0
    %676 = vmatpush1.msra.mxu0 0.0
    %677 = vmatprep.subr.mxu0 0.0
    %678 = vmatpush1.msra.mxu0 0.0
    %679 = vmatprep.subr.mxu0 0.0
    %680 = vmatpush1.msra.mxu0 0.0
    %681 = vmatprep.subr.mxu0 0.0
    %682 = vmatpush1.msra.mxu0 0.0
    %683 = vmatprep.subr.mxu0 0.0
    %684 = vmatpush1.msra.mxu0 0.0
    %685 = vmatprep.subr.mxu0 0.0
    %686 = vmatpush1.msra.mxu0 0.0
    %687 = vmatprep.subr.mxu0 0.0
    %688 = vmatpush1.msra.mxu0 0.0
    %689 = vmatprep.subr.mxu0 0.0
    %690 = vmatpush1.msra.mxu0 0.0
    %691 = vmatprep.subr.mxu0 0.0
    %692 = vmatpush1.msra.mxu0 0.0
    %693 = vmatprep.subr.mxu0 0.0
    %694 = vmatpush1.msra.mxu0 0.0
    %695 = vmatprep.subr.mxu0 0.0
    %696 = vmatpush1.msra.mxu0 0.0
    %697 = vmatprep.subr.mxu0 0.0
    %698 = vmatpush1.msra.mxu0 0.0
    %699 = vmatprep.subr.mxu0 0.0
    %700 = vmatpush1.msra.mxu0 0.0
    %701 = vmatprep.mubr.f32.mxu0 0.0
    %702 = vmatmul.mubr.f32.gmra.mrb[0].mxu0 %v635
    %v703 = vpop.f32.mrb[0].mxu0
    %v704 = vadd.f32 0.0, %v703
    %v705 = vpop.f32.mrb[0].mxu0
    %706 = vdwg.mxu0
    %v707 = vadd.f32 %v629, %v704
    %v708 = vtanh.pop %v707
    %s709 = scalar_lea.vmem [#allocation3], 12
    %710 = vst.msk [vmem:[%s709] sm:$0x3] %vm121, %v708
    %s711 = scalar_lea.vmem [#allocation2], 14
    %v712 = vld [vmem:[%s711] sm:$0x3]
    %v713 = vld [vmem:[%s3] sm:$0xff]
    %v714 = vld [vmem:[%s3 + $0x8] sm:$0xff]
    %v715 = vld [vmem:[%s3 + $0x10] sm:$0xff]
    %v716 = vld [vmem:[%s3 + $0x18] sm:$0xff]
    %v718 = vsel %vm136, %v708, 0
    %720 = vmatprep.subr.mxu0 0.0
    %721 = vmatpush1.msra.mxu0 %v713
    %722 = vmatprep.subr.mxu0 0.0
    %723 = vmatpush1.msra.mxu0 %v714
    %724 = vmatprep.subr.mxu0 0.0
    %725 = vmatpush1.msra.mxu0 %v715
    %726 = vmatprep.subr.mxu0 0.0
    %727 = vmatpush1.msra.mxu0 %v716
    %728 = vmatprep.subr.mxu0 0.0
    %729 = vmatpush1.msra.mxu0 0.0
    %730 = vmatprep.subr.mxu0 0.0
    %731 = vmatpush1.msra.mxu0 0.0
    %732 = vmatprep.subr.mxu0 0.0
    %733 = vmatpush1.msra.mxu0 0.0
    %734 = vmatprep.subr.mxu0 0.0
    %735 = vmatpush1.msra.mxu0 0.0
    %736 = vmatprep.subr.mxu0 0.0
    %737 = vmatpush1.msra.mxu0 0.0
    %738 = vmatprep.subr.mxu0 0.0
    %739 = vmatpush1.msra.mxu0 0.0
    %740 = vmatprep.subr.mxu0 0.0
    %741 = vmatpush1.msra.mxu0 0.0
    %742 = vmatprep.subr.mxu0 0.0
    %743 = vmatpush1.msra.mxu0 0.0
    %744 = vmatprep.subr.mxu0 0.0
    %745 = vmatpush1.msra.mxu0 0.0
    %746 = vmatprep.subr.mxu0 0.0
    %747 = vmatpush1.msra.mxu0 0.0
    %748 = vmatprep.subr.mxu0 0.0
    %749 = vmatpush1.msra.mxu0 0.0
    %750 = vmatprep.subr.mxu0 0.0
    %751 = vmatpush1.msra.mxu0 0.0
    %752 = vmatprep.subr.mxu0 0.0
    %753 = vmatpush1.msra.mxu0 0.0
    %754 = vmatprep.subr.mxu0 0.0
    %755 = vmatpush1.msra.mxu0 0.0
    %756 = vmatprep.subr.mxu0 0.0
    %757 = vmatpush1.msra.mxu0 0.0
    %758 = vmatprep.subr.mxu0 0.0
    %759 = vmatpush1.msra.mxu0 0.0
    %760 = vmatprep.subr.mxu0 0.0
    %761 = vmatpush1.msra.mxu0 0.0
    %762 = vmatprep.subr.mxu0 0.0
    %763 = vmatpush1.msra.mxu0 0.0
    %764 = vmatprep.subr.mxu0 0.0
    %765 = vmatpush1.msra.mxu0 0.0
    %766 = vmatprep.subr.mxu0 0.0
    %767 = vmatpush1.msra.mxu0 0.0
    %768 = vmatprep.subr.mxu0 0.0
    %769 = vmatpush1.msra.mxu0 0.0
    %770 = vmatprep.subr.mxu0 0.0
    %771 = vmatpush1.msra.mxu0 0.0
    %772 = vmatprep.subr.mxu0 0.0
    %773 = vmatpush1.msra.mxu0 0.0
    %774 = vmatprep.subr.mxu0 0.0
    %775 = vmatpush1.msra.mxu0 0.0
    %776 = vmatprep.subr.mxu0 0.0
    %777 = vmatpush1.msra.mxu0 0.0
    %778 = vmatprep.subr.mxu0 0.0
    %779 = vmatpush1.msra.mxu0 0.0
    %780 = vmatprep.subr.mxu0 0.0
    %781 = vmatpush1.msra.mxu0 0.0
    %782 = vmatprep.subr.mxu0 0.0
    %783 = vmatpush1.msra.mxu0 0.0
    %784 = vmatprep.mubr.f32.mxu0 0.0
    %785 = vmatmul.mubr.f32.gmra.mrb[0].mxu0 %v718
    %v786 = vpop.f32.mrb[0].mxu0
    %v787 = vadd.f32 0.0, %v786
    %v788 = vpop.f32.mrb[0].mxu0
    %789 = vdwg.mxu0
    %v790 = vadd.f32 %v712, %v787
    %v791 = vtanh.pop %v790
    %s792 = scalar_lea.vmem [#allocation3], 14
    %793 = vst.msk [vmem:[%s792] sm:$0x3] %vm121, %v791
    %794 = vst.msk [vmem:[#allocation8] sm:$0x3] %vm121, %v791
    %v795 = vld [vmem:[#allocation3] sm:$0x3]
    %v796 = vld [vmem:[#allocation3 + $0x2] sm:$0x3]
    %v797 = vld [vmem:[#allocation3 + $0x4] sm:$0x3]
    %v798 = vld [vmem:[#allocation3 + $0x6] sm:$0x3]
    %v799 = vld [vmem:[#allocation3 + $0x8] sm:$0x3]
    %v800 = vld [vmem:[#allocation3 + $0xa] sm:$0x3]
    %v801 = vld [vmem:[#allocation3 + $0xc] sm:$0x3]
    %v802 = vld [vmem:[#allocation3 + $0xe] sm:$0x3]
    %v803 = vld [vmem:[%s5] sm:$0x1]
    %v805 = vlaneseq
    %v806 = vshrl.u32 %v805, 7
    %v807 = vsub.s32 0, %v806
    %v808 = vrot.slane %v803, %v807
    %v810 = vmul.f32 %v795, %v808
    %v811 = vmul.f32 %v796, %v808
    %v812 = vmul.f32 %v797, %v808
    %v813 = vmul.f32 %v798, %v808
    %v814 = vmul.f32 %v799, %v808
    %v815 = vmul.f32 %v800, %v808
    %v816 = vmul.f32 %v801, %v808
    %v817 = vmul.f32 %v802, %v808
    %v818 = vsel %vm121, %v810, 0.0
    %819 = vadd.xlane.f32.xlu0 %v818
    %v820 = vpop.xlane.xlu0 %819
    %v821 = vsel %vm121, %v811, 0.0
    %822 = vadd.xlane.f32.xlu0 %v821
    %v823 = vpop.xlane.xlu0 %822
    %v824 = vsel %vm121, %v812, 0.0
    %825 = vadd.xlane.f32.xlu0 %v824
    %v826 = vpop.xlane.xlu0 %825
    %v827 = vsel %vm121, %v813, 0.0
    %828 = vadd.xlane.f32.xlu0 %v827
    %v829 = vpop.xlane.xlu0 %828
    %v830 = vsel %vm121, %v814, 0.0
    %831 = vadd.xlane.f32.xlu0 %v830
    %v832 = vpop.xlane.xlu0 %831
    %v833 = vsel %vm121, %v815, 0.0
    %834 = vadd.xlane.f32.xlu0 %v833
    %v835 = vpop.xlane.xlu0 %834
    %v836 = vsel %vm121, %v816, 0.0
    %837 = vadd.xlane.f32.xlu0 %v836
    %v838 = vpop.xlane.xlu0 %837
    %v839 = vsel %vm121, %v817, 0.0
    %840 = vadd.xlane.f32.xlu0 %v839
    %v841 = vpop.xlane.xlu0 %840
    %v842 = vld [vmem:[#allocation4] sm:$0x1]
    %v844 = vlaneseq
    %v845 = vshrl.u32 %v844, 7
    %v846 = vsub.s32 0, %v845
    %v847 = vrot.slane %v842, %v846
    %848 = vset.pattern.permute.xlu0 0
    %849 = vperm.xlu0 %848, %v847
    %v850 = vpop.permute.xlu0 %849
    %v852 = vadd.f32 %v820, %v850
    %v853 = vadd.f32 %v823, %v850
    %v854 = vadd.f32 %v826, %v850
    %v855 = vadd.f32 %v829, %v850
    %v856 = vadd.f32 %v832, %v850
    %v857 = vadd.f32 %v835, %v850
    %v858 = vadd.f32 %v838, %v850
    %v859 = vadd.f32 %v841, %v850
    %v868 = vlaneseq
    %v869 = vand.u32 %v868, 127
    %v870 = vlaneseq
    %v871 = vshrl.u32 %v870, 7
    %v872 = vsub.s32 %v869, %v871
    %v873 = vrot.slane %v852, %v872
    %v874 = vlaneseq
    %v875 = vshrl.u32 %v874, 7
    %v876 = vsub.s32 %v869, %v875
    %v877 = vrot.slane %v853, %v876
    %v878 = vlaneseq
    %v879 = vshrl.u32 %v878, 7
    %v880 = vsub.s32 %v869, %v879
    %v881 = vrot.slane %v854, %v880
    %v882 = vlaneseq
    %v883 = vshrl.u32 %v882, 7
    %v884 = vsub.s32 %v869, %v883
    %v885 = vrot.slane %v855, %v884
    %v886 = vlaneseq
    %v887 = vshrl.u32 %v886, 7
    %v888 = vsub.s32 %v869, %v887
    %v889 = vrot.slane %v856, %v888
    %v890 = vlaneseq
    %v891 = vshrl.u32 %v890, 7
    %v892 = vsub.s32 %v869, %v891
    %v893 = vrot.slane %v857, %v892
    %v894 = vlaneseq
    %v895 = vshrl.u32 %v894, 7
    %v896 = vsub.s32 %v869, %v895
    %v897 = vrot.slane %v858, %v896
    %v898 = vlaneseq
    %v899 = vshrl.u32 %v898, 7
    %v900 = vsub.s32 %v869, %v899
    %v901 = vrot.slane %v859, %v900
    %vm902 = vcmask 1041409
    %v903 = vsel %vm902, %v877, %v873
    %vm904 = vcmask 1042434
    %v905 = vsel %vm904, %v881, %v903
    %vm906 = vcmask 1043459
    %v907 = vsel %vm906, %v885, %v905
    %vm908 = vcmask 1044484
    %v909 = vsel %vm908, %v889, %v907
    %vm910 = vcmask 1045509
    %v911 = vsel %vm910, %v893, %v909
    %vm912 = vcmask 1046534
    %v913 = vsel %vm912, %v897, %v911
    %vm914 = vcmask 1047559
    %v915 = vsel %vm914, %v901, %v913
    %vm917 = vcmask 15360
    %918 = vst.msk [vmem:[%s7] sm:$0xff] %vm917, %v915
    // Predicated region
    $region34: #{tpu_custom_call.1} parent=1 // pred_check
      _
    $region35: #{tpu_custom_call.1} parent=1 // pred_check_branch
      %920 = sbr.rel (0) target = $region37
    $region36: #{tpu_custom_call.1} parent=1 // pred_region
      _
    $region37: #{tpu_custom_call.1} parent=1 // pred_fallthru
      _
    // Predicated region
    $region38: #{tpu_custom_call.1} parent=1 // pred_check
      _
    $region39: #{tpu_custom_call.1} parent=1 // pred_check_branch
      %922 = sbr.rel (0) target = $region41
    $region40: #{tpu_custom_call.1} parent=1 // pred_region
      %s924 = ssub.s32 32, 32
      %925 = vsyncadd [#allocation7], %s924
      %s927 = sshll.u32 [#allocation8], 4
      %s928 = int_to_ptr.vmem [resolvable:$true] %s927
      %930 = dma.vmem_to_hbm [thread:$0]  %s928, 32, %s8, [#allocation7]
    $region41: #{tpu_custom_call.1} parent=1 // pred_fallthru
      _
    // Predicated region
    $region42: #{tpu_custom_call.1} parent=1 // pred_check
      _
    $region43: #{tpu_custom_call.1} parent=1 // pred_check_branch
      %932 = sbr.rel (0) target = $region45
    $region44: #{tpu_custom_call.1} parent=1 // pred_region
      _
    $region45: #{tpu_custom_call.1} parent=1 // pred_fallthru
      _
    // Predicated region
    $region46: #{tpu_custom_call.1} parent=1 // pred_check
      _
    $region47: #{tpu_custom_call.1} parent=1 // pred_check_branch
      %934 = sbr.rel (0) target = $region49
    $region48: #{tpu_custom_call.1} parent=1 // pred_region
      %935 = dma.done [#allocation7], 32
    $region49: #{tpu_custom_call.1} parent=1 // pred_fallthru
      _
    %936 = vsyncpa [#allocation6], 1
    %937 = vsyncpa [#allocation7], 1

</llo_original>
